<compile_context>
chip_gen: v6e
topology: v6e:2x2x1
jax: 0.10.0
libtpu: 0.0.40
codegen_flags: <defaults>
</compile_context>

<pallas_src>
import functools

import numpy as np
import jax
import jax.numpy as jnp
from jax import lax
from jax.experimental import pallas as pl
from jax.experimental.pallas import tpu as pltpu

C_GAP = 2      # "C"     : max gap between spikes inside one cluster
DELTA = 0.05   # "delta" : regularisation weight


def _stca_tca_kernel(ratio_ref, labels_ref, v_ref, contrib_ref, spike_ref,
                     *, C, delta, N, TILE_N):
    v = v_ref[...].astype(jnp.float32)             # (T, Nt) membrane potentials
    labels = labels_ref[...].astype(jnp.float32)   # (1, Nt) target cluster counts
    ratio = ratio_ref[0]                           # scalar from SMEM
    T, Nt = v.shape

    NEG = jnp.float32(-1e30)
    BIGI = jnp.int32(jnp.iinfo(jnp.int32).max)

    t_i = lax.broadcasted_iota(jnp.int32, (T, Nt), 0)          # time index

    # Tail-lane mask (grid may not divide N; garbage lanes must stay inert).
    lane = lax.broadcasted_iota(jnp.int32, (1, Nt), 1) + pl.program_id(1) * TILE_N
    lane_ok = lane < N                                          # (1, Nt)

    spike = (v >= 0.0) & lane_ok
    spike_f = spike.astype(jnp.float32)

    # Windowed spike counts over the previous / next C timesteps via sublane
    # rolls (XLU) -- no O(T^2) operands anywhere.
    prev_cnt = jnp.zeros_like(spike_f)
    next_cnt = jnp.zeros_like(spike_f)
    for s in range(1, min(C, T - 1) + 1):
        fwd = pltpu.roll(spike_f, shift=s, axis=0)        # fwd[t] = spike[t-s]
        prev_cnt = prev_cnt + jnp.where(t_i >= s, fwd, 0.0)
        bwd = pltpu.roll(spike_f, shift=T - s, axis=0)    # bwd[t] = spike[t+s]
        next_cnt = next_cnt + jnp.where(t_i < T - s, bwd, 0.0)

    start = spike & (prev_cnt < 0.5)       # first spike of each cluster
    is_end = spike & (next_cnt < 0.5)      # last spike of each cluster

    nc = jnp.sum(start.astype(jnp.float32), axis=0, keepdims=True)   # (1, Nt)
    spike_ref[...] = jnp.where(lane_ok, nc, 0.0)
    dd = (delta * ratio) * nc

    # ---------- branch: labels > num_cluster (need MORE clusters) ----------
    # union over clusters of [first-C, last+C]  ==  "some spike within C of t"
    unmask = (prev_cnt + next_cnt + spike_f) < 0.5
    max_unmasked = jnp.max(jnp.where(unmask, v, NEG), axis=0, keepdims=True)
    # fused "any unmasked timestep" check (valid v is never ~ -1e29)
    has_unmasked = max_unmasked > jnp.float32(-1e29)
    first_t = jnp.min(jnp.where(spike, t_i, T), axis=0, keepdims=True)
    v_first = jnp.max(jnp.where(t_i == first_t, v, NEG), axis=0, keepdims=True)
    # TODO(synk): PyTorch picks a *random* spike when every timestep is masked;
    # here we deterministically pick the neuron's first spike.
    term_under = jnp.where(has_unmasked, -max_unmasked, v_first) + dd

    # ---------- branch: labels < num_cluster (too MANY clusters) ----------
    # Inclusive prefix sum of spikes over time: log-step Hillis-Steele scan
    # (exact in f32 for 0/1 data; replaces the old (T,T) tri matmul).
    spkcum = spike_f
    d = 1
    while d < T:
        sh = pltpu.roll(spkcum, shift=d, axis=0)
        spkcum = spkcum + jnp.where(t_i >= d, sh, 0.0)
        d *= 2
    spkcum_i = spkcum.astype(jnp.int32)

    # Forward-fill, from each cluster start down through its cluster,
    # (a) #spikes strictly before the cluster and (b) the cluster start time,
    # via log-step prefix-max scans (values at starts are strictly increasing).
    a_fill = jnp.where(start, spkcum_i - 1, -1)
    f_fill = jnp.where(start, t_i, -1)
    d = 1
    while d < T:
        ok = t_i >= d
        a_sh = pltpu.roll(a_fill, shift=d, axis=0)
        f_sh = pltpu.roll(f_fill, shift=d, axis=0)
        a_fill = jnp.maximum(a_fill, jnp.where(ok, a_sh, -1))
        f_fill = jnp.maximum(f_fill, jnp.where(ok, f_sh, -1))
        d *= 2

    # torch.argmin(end-beg): smallest spike count, ties -> earliest cluster.
    # Lexicographic key (count, start_time); start_time replaces the old
    # cluster-index cumsum (ordering is identical, key < T*T + T fits int32).
    count_i = spkcum_i - a_fill                       # spikes in this cluster
    key = jnp.where(is_end, count_i * T + f_fill, BIGI)
    min_key = jnp.min(key, axis=0, keepdims=True)
    selected = is_end & (key == min_key)              # exactly one per neuron
    L = jnp.min(jnp.where(selected, t_i, T), axis=0, keepdims=True)
    F = jnp.min(jnp.where(selected, f_fill, T), axis=0, keepdims=True)
    span = (t_i >= F) & (t_i <= L)
    max_span = jnp.max(jnp.where(span, v, NEG), axis=0, keepdims=True)
    term_over = max_span + dd

    contrib = (jnp.where(labels > nc, term_under, 0.0)
               + jnp.where(labels < nc, term_over, 0.0))
    contrib_ref[...] = jnp.where(lane_ok, contrib, 0.0)


def stca_tca_loss(vmem, vlastmem, labels_t, ratio, *, C=C_GAP, delta=DELTA):
    del vlastmem  # unused, exactly as in the PyTorch forward
    B, T, N = vmem.shape

    # Lane tile: full N when it fits one tile; otherwise 256 lanes (128 for
    # very long T to keep the per-step VMEM temporaries small, e.g. on v7x).
    if N <= 128:
        TILE_N = N
    else:
        TILE_N = 128 if T >= 2048 else 256
    grid_n = pl.cdiv(N, TILE_N)

    labels3 = labels_t.reshape(B, 1, N)
    ratio_arr = jnp.asarray([ratio], dtype=jnp.float32)

    # VMEM budget: double-buffered input slab + ~16 live (T,TILE_N) f32 temps.
    in_bytes = jnp.dtype(vmem.dtype).itemsize
    vmem_limit = int(min(64 * 1024 * 1024,
                         max(8 * 1024 * 1024,
                             T * TILE_N * (2 * in_bytes + 18 * 4) + (2 << 20))))

    kernel = functools.partial(_stca_tca_kernel, C=C, delta=delta,
                               N=N, TILE_N=TILE_N)

    contrib3, spike3 = pl.pallas_call(
        kernel,
        out_shape=(jax.ShapeDtypeStruct((B, 1, N), jnp.float32),
                   jax.ShapeDtypeStruct((B, 1, N), jnp.float32)),
        grid_spec=pl.GridSpec(
            grid=(B, grid_n),
            in_specs=[
                pl.BlockSpec(memory_space=pltpu.MemorySpace.SMEM),        # ratio
                pl.BlockSpec((None, 1, TILE_N), lambda b, j: (b, 0, j)),  # labels_t
                pl.BlockSpec((None, T, TILE_N), lambda b, j: (b, 0, j)),  # vmem
            ],
            out_specs=(
                pl.BlockSpec((None, 1, TILE_N), lambda b, j: (b, 0, j)),  # per-neuron loss
                pl.BlockSpec((None, 1, TILE_N), lambda b, j: (b, 0, j)),  # spike_output
            ),
        ),
        compiler_params=pltpu.CompilerParams(
            dimension_semantics=("parallel", "parallel"),
            vmem_limit_bytes=vmem_limit,
        ),
    )(ratio_arr, labels3, vmem)

    loss = jnp.sum(contrib3)            # lane-dense partials reduced outside
    spike_out = spike3[:, 0, :]
    return loss, spike_out


def _reference(vmem, labels, ratio, C, delta):
    """Loopy NumPy port of the PyTorch forward (first-spike instead of random)."""
    B, T, N = vmem.shape
    loss = 0.0
    spike_out = np.zeros((B, N), np.float32)
    for b in range(B):
        for n in range(N):
            v = vmem[b, :, n]
            pos = np.nonzero(v >= 0)[0]
            beg, end = [0], []
            for i in range(1, len(pos)):
                if pos[i] - pos[i - 1] > C:
                    end.append(i - 1)
                    beg.append(i)
            end.append(len(pos) - 1)
            nc = len(beg)
            if end[-1] < 0:
                nc = 0
            spike_out[b, n] = nc
            if labels[b, n] > nc:
                mask = np.zeros(T)
                for ic in range(nc):
                    cps = pos[beg[ic]:end[ic] + 1]
                    lmin = max(cps[0] - C, 0)
                    rmax = min(cps[-1] + C, T - 1)
                    mask[lmin:rmax + 1] = 1
                if np.sum(mask == 0) <= 0:
                    loss = loss + v[pos[0]] + delta * ratio * nc  # deterministic pick
                else:
                    loss = loss - np.max(v[mask == 0]) + delta * ratio * nc
            if labels[b, n] < nc:
                ends, begs = np.array(end), np.array(beg)
                idx = int(np.argmin(ends - begs))
                cps = pos[begs[idx]:ends[idx] + 1]
                mask = np.zeros(T)
                mask[cps[0]:cps[-1] + 1] = 1
                loss = loss + np.max(v[mask == 1]) + delta * ratio * nc
    return np.float32(loss), spike_out


if __name__ == "__main__":
    key = jax.random.PRNGKey(0)
    k1, k2 = jax.random.split(key)
    B, T, N = 2, 16, 8
    vmem = jax.random.normal(k1, (B, T, N), dtype=jnp.float32)
    vlastmem = jnp.zeros((B, T, N), jnp.float32)          # unused by the loss
    labels_t = jax.random.randint(k2, (B, N), 0, 4)
    ratio = 0.7

    loss, spike_out = stca_tca_loss(vmem, vlastmem, labels_t, ratio)
    jax.block_until_ready((loss, spike_out))

    ref_loss, ref_spike = _reference(np.asarray(vmem), np.asarray(labels_t),
                                     ratio, C_GAP, DELTA)
    assert np.allclose(np.asarray(spike_out), ref_spike), (spike_out, ref_spike)
    assert np.allclose(float(loss), ref_loss, atol=1e-4, rtol=1e-4), (float(loss), ref_loss)
    print("KERNEL_OK")
</pallas_src>

<mosaic_0001>
module attributes {stable_mosaic.version = 11 : i64} {
  func.func @_stca_tca_kernel(%arg0: i32, %arg1: i32, %arg2: memref<1xf32, #tpu.memory_space<smem>>, %arg3: memref<1x1x8xi32, #tpu.memory_space<vmem>>, %arg4: memref<1x16x8xf32, #tpu.memory_space<vmem>>, %arg5: memref<1x1x8xf32, #tpu.memory_space<vmem>>, %arg6: memref<1x1x8xf32, #tpu.memory_space<vmem>>) attributes {dimension_semantics = [#tpu.dimension_semantics<parallel>, #tpu.dimension_semantics<parallel>], iteration_bounds = array<i64: 2, 1>, scalar_prefetch = 0 : i64, scratch_operands = 0 : i64, tpu.core_type = #tpu.core_type<tc>, window_params = [{transform_indices = @transform_0, window_bounds = array<i64: 1>}, {transform_indices = @transform_1, window_bounds = array<i64: 1, 1, 8>}, {transform_indices = @transform_2, window_bounds = array<i64: 1, 16, 8>}, {transform_indices = @transform_3, window_bounds = array<i64: 1, 1, 8>}, {transform_indices = @transform_4, window_bounds = array<i64: 1, 1, 8>}]} {
    %c0 = arith.constant 0 : index
    %c0_0 = arith.constant 0 : index
    %c0_1 = arith.constant 0 : index
    %0 = vector.load %arg4[%c0, %c0_0, %c0_1] : memref<1x16x8xf32, #tpu.memory_space<vmem>>, vector<1x16x8xf32>
    %1 = vector.shape_cast %0 : vector<1x16x8xf32> to vector<16x8xf32>
    %c0_2 = arith.constant 0 : index
    %c0_3 = arith.constant 0 : index
    %c0_4 = arith.constant 0 : index
    %2 = vector.load %arg3[%c0_2, %c0_3, %c0_4] : memref<1x1x8xi32, #tpu.memory_space<vmem>>, vector<1x1x8xi32>
    %3 = vector.shape_cast %2 : vector<1x1x8xi32> to vector<1x8xi32>
    %4 = arith.sitofp %3 : vector<1x8xi32> to vector<1x8xf32>
    %c0_5 = arith.constant 0 : index
    %5 = memref.load %arg2[%c0_5] : memref<1xf32, #tpu.memory_space<smem>>
    %6 = tpu.iota {dimensions = array<i32: 0>} : vector<16x8xi32>
    %7 = tpu.iota {dimensions = array<i32: 1>} : vector<1x8xi32>
    %c8_i32 = arith.constant 8 : i32
    %8 = arith.muli %arg1, %c8_i32 : i32
    %9 = vector.broadcast %8 : i32 to vector<1x8xi32>
    %10 = arith.addi %7, %9 : vector<1x8xi32>
    %c8_i32_6 = arith.constant 8 : i32
    %11 = vector.broadcast %c8_i32_6 : i32 to vector<1x8xi32>
    %12 = arith.cmpi slt, %10, %11 : vector<1x8xi32>
    %cst = arith.constant 0.000000e+00 : f32
    %13 = vector.broadcast %cst : f32 to vector<16x8xf32>
    %14 = arith.cmpf oge, %1, %13 : vector<16x8xf32>
    %15 = vector.broadcast %12 : vector<1x8xi1> to vector<16x8xi1>
    %16 = arith.andi %14, %15 : vector<16x8xi1>
    %17 = arith.extui %16 : vector<16x8xi1> to vector<16x8xi32>
    %18 = arith.sitofp %17 : vector<16x8xi32> to vector<16x8xf32>
    %cst_7 = arith.constant 0.000000e+00 : f32
    %19 = vector.broadcast %cst_7 : f32 to vector<16x8xf32>
    %cst_8 = arith.constant 0.000000e+00 : f32
    %20 = vector.broadcast %cst_8 : f32 to vector<16x8xf32>
    %c1_i32 = arith.constant 1 : i32
    %21 = tpu.dynamic_rotate %18 by %c1_i32 dim 0 : vector<16x8xf32>, i32 -> vector<16x8xf32>
    %c1_i32_9 = arith.constant 1 : i32
    %22 = vector.broadcast %c1_i32_9 : i32 to vector<16x8xi32>
    %23 = arith.cmpi sge, %6, %22 : vector<16x8xi32>
    %cst_10 = arith.constant 0.000000e+00 : f32
    %24 = vector.broadcast %cst_10 : f32 to vector<16x8xf32>
    %25 = arith.select %23, %21, %24 : vector<16x8xi1>, vector<16x8xf32>
    %26 = arith.addf %19, %25 : vector<16x8xf32>
    %c15_i32 = arith.constant 15 : i32
    %27 = tpu.dynamic_rotate %18 by %c15_i32 dim 0 : vector<16x8xf32>, i32 -> vector<16x8xf32>
    %c15_i32_11 = arith.constant 15 : i32
    %28 = vector.broadcast %c15_i32_11 : i32 to vector<16x8xi32>
    %29 = arith.cmpi slt, %6, %28 : vector<16x8xi32>
    %cst_12 = arith.constant 0.000000e+00 : f32
    %30 = vector.broadcast %cst_12 : f32 to vector<16x8xf32>
    %31 = arith.select %29, %27, %30 : vector<16x8xi1>, vector<16x8xf32>
    %32 = arith.addf %20, %31 : vector<16x8xf32>
    %c2_i32 = arith.constant 2 : i32
    %33 = tpu.dynamic_rotate %18 by %c2_i32 dim 0 : vector<16x8xf32>, i32 -> vector<16x8xf32>
    %c2_i32_13 = arith.constant 2 : i32
    %34 = vector.broadcast %c2_i32_13 : i32 to vector<16x8xi32>
    %35 = arith.cmpi sge, %6, %34 : vector<16x8xi32>
    %cst_14 = arith.constant 0.000000e+00 : f32
    %36 = vector.broadcast %cst_14 : f32 to vector<16x8xf32>
    %37 = arith.select %35, %33, %36 : vector<16x8xi1>, vector<16x8xf32>
    %38 = arith.addf %26, %37 : vector<16x8xf32>
    %c14_i32 = arith.constant 14 : i32
    %39 = tpu.dynamic_rotate %18 by %c14_i32 dim 0 : vector<16x8xf32>, i32 -> vector<16x8xf32>
    %c14_i32_15 = arith.constant 14 : i32
    %40 = vector.broadcast %c14_i32_15 : i32 to vector<16x8xi32>
    %41 = arith.cmpi slt, %6, %40 : vector<16x8xi32>
    %cst_16 = arith.constant 0.000000e+00 : f32
    %42 = vector.broadcast %cst_16 : f32 to vector<16x8xf32>
    %43 = arith.select %41, %39, %42 : vector<16x8xi1>, vector<16x8xf32>
    %44 = arith.addf %32, %43 : vector<16x8xf32>
    %cst_17 = arith.constant 5.000000e-01 : f32
    %45 = vector.broadcast %cst_17 : f32 to vector<16x8xf32>
    %46 = arith.cmpf olt, %38, %45 : vector<16x8xf32>
    %47 = arith.andi %16, %46 : vector<16x8xi1>
    %cst_18 = arith.constant 5.000000e-01 : f32
    %48 = vector.broadcast %cst_18 : f32 to vector<16x8xf32>
    %49 = arith.cmpf olt, %44, %48 : vector<16x8xf32>
    %50 = arith.andi %16, %49 : vector<16x8xi1>
    %51 = arith.extui %47 : vector<16x8xi1> to vector<16x8xi32>
    %52 = arith.sitofp %51 : vector<16x8xi32> to vector<16x8xf32>
    %cst_19 = arith.constant dense<0.000000e+00> : vector<8xf32>
    %53 = vector.multi_reduction <add>, %52, %cst_19 [0] : vector<16x8xf32> to vector<8xf32>
    %54 = vector.shape_cast %53 : vector<8xf32> to vector<1x8xf32>
    %cst_20 = arith.constant 0.000000e+00 : f32
    %55 = vector.broadcast %cst_20 : f32 to vector<1x8xf32>
    %56 = arith.select %12, %54, %55 : vector<1x8xi1>, vector<1x8xf32>
    %c0_21 = arith.constant 0 : index
    %c0_22 = arith.constant 0 : index
    %c0_23 = arith.constant 0 : index
    %57 = vector.load %arg6[%c0_21, %c0_22, %c0_23] : memref<1x1x8xf32, #tpu.memory_space<vmem>>, vector<1x1x8xf32>
    %58 = vector.shape_cast %57 : vector<1x1x8xf32> to vector<1x8xf32>
    %59 = vector.shape_cast %56 : vector<1x8xf32> to vector<1x1x8xf32>
    tpu.vector_store %arg6[%c0_21, %c0_22, %c0_23], %59 {strides = array<i32>} : memref<1x1x8xf32, #tpu.memory_space<vmem>>, vector<1x1x8xf32>,
    %cst_24 = arith.constant 5.000000e-02 : f32
    %60 = arith.mulf %cst_24, %5 : f32
    %61 = vector.broadcast %60 : f32 to vector<1x8xf32>
    %62 = arith.mulf %61, %54 : vector<1x8xf32>
    %63 = arith.addf %38, %44 : vector<16x8xf32>
    %64 = arith.addf %63, %18 : vector<16x8xf32>
    %cst_25 = arith.constant 5.000000e-01 : f32
    %65 = vector.broadcast %cst_25 : f32 to vector<16x8xf32>
    %66 = arith.cmpf olt, %64, %65 : vector<16x8xf32>
    %cst_26 = arith.constant -1.000000e+30 : f32
    %67 = vector.broadcast %cst_26 : f32 to vector<16x8xf32>
    %68 = arith.select %66, %1, %67 : vector<16x8xi1>, vector<16x8xf32>
    %cst_27 = arith.constant dense<0xFF800000> : vector<8xf32>
    %69 = vector.multi_reduction <maximumf>, %68, %cst_27 [0] : vector<16x8xf32> to vector<8xf32>
    %70 = vector.shape_cast %69 : vector<8xf32> to vector<1x8xf32>
    %cst_28 = arith.constant -1.000000e+29 : f32
    %71 = vector.broadcast %cst_28 : f32 to vector<1x8xf32>
    %72 = arith.cmpf ogt, %70, %71 : vector<1x8xf32>
    %c16_i32 = arith.constant 16 : i32
    %73 = vector.broadcast %c16_i32 : i32 to vector<16x8xi32>
    %74 = arith.select %16, %6, %73 : vector<16x8xi1>, vector<16x8xi32>
    %cst_29 = arith.constant dense<2147483647> : vector<8xi32>
    %75 = vector.multi_reduction <minsi>, %74, %cst_29 [0] : vector<16x8xi32> to vector<8xi32>
    %76 = vector.shape_cast %75 : vector<8xi32> to vector<1x8xi32>
    %77 = vector.broadcast %76 : vector<1x8xi32> to vector<16x8xi32>
    %78 = arith.cmpi eq, %6, %77 : vector<16x8xi32>
    %cst_30 = arith.constant -1.000000e+30 : f32
    %79 = vector.broadcast %cst_30 : f32 to vector<16x8xf32>
    %80 = arith.select %78, %1, %79 : vector<16x8xi1>, vector<16x8xf32>
    %cst_31 = arith.constant dense<0xFF800000> : vector<8xf32>
    %81 = vector.multi_reduction <maximumf>, %80, %cst_31 [0] : vector<16x8xf32> to vector<8xf32>
    %82 = vector.shape_cast %81 : vector<8xf32> to vector<1x8xf32>
    %cst_32 = arith.constant 0.000000e+00 : f32
    %83 = vector.broadcast %cst_32 : f32 to vector<1x8xf32>
    %84 = arith.subf %83, %70 : vector<1x8xf32>
    %85 = arith.select %72, %84, %82 : vector<1x8xi1>, vector<1x8xf32>
    %86 = arith.addf %85, %62 : vector<1x8xf32>
    %c1_i32_33 = arith.constant 1 : i32
    %87 = tpu.dynamic_rotate %18 by %c1_i32_33 dim 0 : vector<16x8xf32>, i32 -> vector<16x8xf32>
    %c1_i32_34 = arith.constant 1 : i32
    %88 = vector.broadcast %c1_i32_34 : i32 to vector<16x8xi32>
    %89 = arith.cmpi sge, %6, %88 : vector<16x8xi32>
    %cst_35 = arith.constant 0.000000e+00 : f32
    %90 = vector.broadcast %cst_35 : f32 to vector<16x8xf32>
    %91 = arith.select %89, %87, %90 : vector<16x8xi1>, vector<16x8xf32>
    %92 = arith.addf %18, %91 : vector<16x8xf32>
    %c2_i32_36 = arith.constant 2 : i32
    %93 = tpu.dynamic_rotate %92 by %c2_i32_36 dim 0 : vector<16x8xf32>, i32 -> vector<16x8xf32>
    %c2_i32_37 = arith.constant 2 : i32
    %94 = vector.broadcast %c2_i32_37 : i32 to vector<16x8xi32>
    %95 = arith.cmpi sge, %6, %94 : vector<16x8xi32>
    %cst_38 = arith.constant 0.000000e+00 : f32
    %96 = vector.broadcast %cst_38 : f32 to vector<16x8xf32>
    %97 = arith.select %95, %93, %96 : vector<16x8xi1>, vector<16x8xf32>
    %98 = arith.addf %92, %97 : vector<16x8xf32>
    %c4_i32 = arith.constant 4 : i32
    %99 = tpu.dynamic_rotate %98 by %c4_i32 dim 0 : vector<16x8xf32>, i32 -> vector<16x8xf32>
    %c4_i32_39 = arith.constant 4 : i32
    %100 = vector.broadcast %c4_i32_39 : i32 to vector<16x8xi32>
    %101 = arith.cmpi sge, %6, %100 : vector<16x8xi32>
    %cst_40 = arith.constant 0.000000e+00 : f32
    %102 = vector.broadcast %cst_40 : f32 to vector<16x8xf32>
    %103 = arith.select %101, %99, %102 : vector<16x8xi1>, vector<16x8xf32>
    %104 = arith.addf %98, %103 : vector<16x8xf32>
    %c8_i32_41 = arith.constant 8 : i32
    %105 = tpu.dynamic_rotate %104 by %c8_i32_41 dim 0 : vector<16x8xf32>, i32 -> vector<16x8xf32>
    %c8_i32_42 = arith.constant 8 : i32
    %106 = vector.broadcast %c8_i32_42 : i32 to vector<16x8xi32>
    %107 = arith.cmpi sge, %6, %106 : vector<16x8xi32>
    %cst_43 = arith.constant 0.000000e+00 : f32
    %108 = vector.broadcast %cst_43 : f32 to vector<16x8xf32>
    %109 = arith.select %107, %105, %108 : vector<16x8xi1>, vector<16x8xf32>
    %110 = arith.addf %104, %109 : vector<16x8xf32>
    %111 = arith.fptosi %110 : vector<16x8xf32> to vector<16x8xi32>
    %c1_i32_44 = arith.constant 1 : i32
    %112 = vector.broadcast %c1_i32_44 : i32 to vector<16x8xi32>
    %113 = arith.subi %111, %112 : vector<16x8xi32>
    %c-1_i32 = arith.constant -1 : i32
    %114 = vector.broadcast %c-1_i32 : i32 to vector<16x8xi32>
    %115 = arith.select %47, %113, %114 : vector<16x8xi1>, vector<16x8xi32>
    %c-1_i32_45 = arith.constant -1 : i32
    %116 = vector.broadcast %c-1_i32_45 : i32 to vector<16x8xi32>
    %117 = arith.select %47, %6, %116 : vector<16x8xi1>, vector<16x8xi32>
    %c1_i32_46 = arith.constant 1 : i32
    %118 = vector.broadcast %c1_i32_46 : i32 to vector<16x8xi32>
    %119 = arith.cmpi sge, %6, %118 : vector<16x8xi32>
    %c1_i32_47 = arith.constant 1 : i32
    %120 = tpu.dynamic_rotate %115 by %c1_i32_47 dim 0 : vector<16x8xi32>, i32 -> vector<16x8xi32>
    %c1_i32_48 = arith.constant 1 : i32
    %121 = tpu.dynamic_rotate %117 by %c1_i32_48 dim 0 : vector<16x8xi32>, i32 -> vector<16x8xi32>
    %c-1_i32_49 = arith.constant -1 : i32
    %122 = vector.broadcast %c-1_i32_49 : i32 to vector<16x8xi32>
    %123 = arith.select %119, %120, %122 : vector<16x8xi1>, vector<16x8xi32>
    %124 = arith.maxsi %115, %123 : vector<16x8xi32>
    %c-1_i32_50 = arith.constant -1 : i32
    %125 = vector.broadcast %c-1_i32_50 : i32 to vector<16x8xi32>
    %126 = arith.select %119, %121, %125 : vector<16x8xi1>, vector<16x8xi32>
    %127 = arith.maxsi %117, %126 : vector<16x8xi32>
    %c2_i32_51 = arith.constant 2 : i32
    %128 = vector.broadcast %c2_i32_51 : i32 to vector<16x8xi32>
    %129 = arith.cmpi sge, %6, %128 : vector<16x8xi32>
    %c2_i32_52 = arith.constant 2 : i32
    %130 = tpu.dynamic_rotate %124 by %c2_i32_52 dim 0 : vector<16x8xi32>, i32 -> vector<16x8xi32>
    %c2_i32_53 = arith.constant 2 : i32
    %131 = tpu.dynamic_rotate %127 by %c2_i32_53 dim 0 : vector<16x8xi32>, i32 -> vector<16x8xi32>
    %c-1_i32_54 = arith.constant -1 : i32
    %132 = vector.broadcast %c-1_i32_54 : i32 to vector<16x8xi32>
    %133 = arith.select %129, %130, %132 : vector<16x8xi1>, vector<16x8xi32>
    %134 = arith.maxsi %124, %133 : vector<16x8xi32>
    %c-1_i32_55 = arith.constant -1 : i32
    %135 = vector.broadcast %c-1_i32_55 : i32 to vector<16x8xi32>
    %136 = arith.select %129, %131, %135 : vector<16x8xi1>, vector<16x8xi32>
    %137 = arith.maxsi %127, %136 : vector<16x8xi32>
    %c4_i32_56 = arith.constant 4 : i32
    %138 = vector.broadcast %c4_i32_56 : i32 to vector<16x8xi32>
    %139 = arith.cmpi sge, %6, %138 : vector<16x8xi32>
    %c4_i32_57 = arith.constant 4 : i32
    %140 = tpu.dynamic_rotate %134 by %c4_i32_57 dim 0 : vector<16x8xi32>, i32 -> vector<16x8xi32>
    %c4_i32_58 = arith.constant 4 : i32
    %141 = tpu.dynamic_rotate %137 by %c4_i32_58 dim 0 : vector<16x8xi32>, i32 -> vector<16x8xi32>
    %c-1_i32_59 = arith.constant -1 : i32
    %142 = vector.broadcast %c-1_i32_59 : i32 to vector<16x8xi32>
    %143 = arith.select %139, %140, %142 : vector<16x8xi1>, vector<16x8xi32>
    %144 = arith.maxsi %134, %143 : vector<16x8xi32>
    %c-1_i32_60 = arith.constant -1 : i32
    %145 = vector.broadcast %c-1_i32_60 : i32 to vector<16x8xi32>
    %146 = arith.select %139, %141, %145 : vector<16x8xi1>, vector<16x8xi32>
    %147 = arith.maxsi %137, %146 : vector<16x8xi32>
    %c8_i32_61 = arith.constant 8 : i32
    %148 = vector.broadcast %c8_i32_61 : i32 to vector<16x8xi32>
    %149 = arith.cmpi sge, %6, %148 : vector<16x8xi32>
    %c8_i32_62 = arith.constant 8 : i32
    %150 = tpu.dynamic_rotate %144 by %c8_i32_62 dim 0 : vector<16x8xi32>, i32 -> vector<16x8xi32>
    %c8_i32_63 = arith.constant 8 : i32
    %151 = tpu.dynamic_rotate %147 by %c8_i32_63 dim 0 : vector<16x8xi32>, i32 -> vector<16x8xi32>
    %c-1_i32_64 = arith.constant -1 : i32
    %152 = vector.broadcast %c-1_i32_64 : i32 to vector<16x8xi32>
    %153 = arith.select %149, %150, %152 : vector<16x8xi1>, vector<16x8xi32>
    %154 = arith.maxsi %144, %153 : vector<16x8xi32>
    %c-1_i32_65 = arith.constant -1 : i32
    %155 = vector.broadcast %c-1_i32_65 : i32 to vector<16x8xi32>
    %156 = arith.select %149, %151, %155 : vector<16x8xi1>, vector<16x8xi32>
    %157 = arith.maxsi %147, %156 : vector<16x8xi32>
    %158 = arith.subi %111, %154 : vector<16x8xi32>
    %c16_i32_66 = arith.constant 16 : i32
    %159 = vector.broadcast %c16_i32_66 : i32 to vector<16x8xi32>
    %160 = arith.muli %158, %159 : vector<16x8xi32>
    %161 = arith.addi %160, %157 : vector<16x8xi32>
    %c2147483647_i32 = arith.constant 2147483647 : i32
    %162 = vector.broadcast %c2147483647_i32 : i32 to vector<16x8xi32>
    %163 = arith.select %50, %161, %162 : vector<16x8xi1>, vector<16x8xi32>
    %cst_67 = arith.constant dense<2147483647> : vector<8xi32>
    %164 = vector.multi_reduction <minsi>, %163, %cst_67 [0] : vector<16x8xi32> to vector<8xi32>
    %165 = vector.shape_cast %164 : vector<8xi32> to vector<1x8xi32>
    %166 = vector.broadcast %165 : vector<1x8xi32> to vector<16x8xi32>
    %167 = arith.cmpi eq, %163, %166 : vector<16x8xi32>
    %168 = arith.andi %50, %167 : vector<16x8xi1>
    %c16_i32_68 = arith.constant 16 : i32
    %169 = vector.broadcast %c16_i32_68 : i32 to vector<16x8xi32>
    %170 = arith.select %168, %6, %169 : vector<16x8xi1>, vector<16x8xi32>
    %cst_69 = arith.constant dense<2147483647> : vector<8xi32>
    %171 = vector.multi_reduction <minsi>, %170, %cst_69 [0] : vector<16x8xi32> to vector<8xi32>
    %172 = vector.shape_cast %171 : vector<8xi32> to vector<1x8xi32>
    %c16_i32_70 = arith.constant 16 : i32
    %173 = vector.broadcast %c16_i32_70 : i32 to vector<16x8xi32>
    %174 = arith.select %168, %157, %173 : vector<16x8xi1>, vector<16x8xi32>
    %cst_71 = arith.constant dense<2147483647> : vector<8xi32>
    %175 = vector.multi_reduction <minsi>, %174, %cst_71 [0] : vector<16x8xi32> to vector<8xi32>
    %176 = vector.shape_cast %175 : vector<8xi32> to vector<1x8xi32>
    %177 = vector.broadcast %176 : vector<1x8xi32> to vector<16x8xi32>
    %178 = arith.cmpi sge, %6, %177 : vector<16x8xi32>
    %179 = vector.broadcast %172 : vector<1x8xi32> to vector<16x8xi32>
    %180 = arith.cmpi sle, %6, %179 : vector<16x8xi32>
    %181 = arith.andi %178, %180 : vector<16x8xi1>
    %cst_72 = arith.constant -1.000000e+30 : f32
    %182 = vector.broadcast %cst_72 : f32 to vector<16x8xf32>
    %183 = arith.select %181, %1, %182 : vector<16x8xi1>, vector<16x8xf32>
    %cst_73 = arith.constant dense<0xFF800000> : vector<8xf32>
    %184 = vector.multi_reduction <maximumf>, %183, %cst_73 [0] : vector<16x8xf32> to vector<8xf32>
    %185 = vector.shape_cast %184 : vector<8xf32> to vector<1x8xf32>
    %186 = arith.addf %185, %62 : vector<1x8xf32>
    %187 = arith.cmpf ogt, %4, %54 : vector<1x8xf32>
    %cst_74 = arith.constant 0.000000e+00 : f32
    %188 = vector.broadcast %cst_74 : f32 to vector<1x8xf32>
    %189 = arith.select %187, %86, %188 : vector<1x8xi1>, vector<1x8xf32>
    %190 = arith.cmpf olt, %4, %54 : vector<1x8xf32>
    %cst_75 = arith.constant 0.000000e+00 : f32
    %191 = vector.broadcast %cst_75 : f32 to vector<1x8xf32>
    %192 = arith.select %190, %186, %191 : vector<1x8xi1>, vector<1x8xf32>
    %193 = arith.addf %189, %192 : vector<1x8xf32>
    %cst_76 = arith.constant 0.000000e+00 : f32
    %194 = vector.broadcast %cst_76 : f32 to vector<1x8xf32>
    %195 = arith.select %12, %193, %194 : vector<1x8xi1>, vector<1x8xf32>
    %c0_77 = arith.constant 0 : index
    %c0_78 = arith.constant 0 : index
    %c0_79 = arith.constant 0 : index
    %196 = vector.load %arg5[%c0_77, %c0_78, %c0_79] : memref<1x1x8xf32, #tpu.memory_space<vmem>>, vector<1x1x8xf32>
    %197 = vector.shape_cast %196 : vector<1x1x8xf32> to vector<1x8xf32>
    %198 = vector.shape_cast %195 : vector<1x8xf32> to vector<1x1x8xf32>
    tpu.vector_store %arg5[%c0_77, %c0_78, %c0_79], %198 {strides = array<i32>} : memref<1x1x8xf32, #tpu.memory_space<vmem>>, vector<1x1x8xf32>,
    return
  }
  func.func @transform_0(%arg0: i32, %arg1: i32) -> i32 {
    %c0_i32 = arith.constant 0 : i32
    %c0_i32_0 = arith.constant 0 : i32
    return %c0_i32 : i32
  }
  func.func @transform_1(%arg0: i32, %arg1: i32) -> (i32, i32, i32) {
    %c0_i32 = arith.constant 0 : i32
    %c0_i32_0 = arith.constant 0 : i32
    return %arg0, %c0_i32, %arg1 : i32, i32, i32
  }
  func.func @transform_2(%arg0: i32, %arg1: i32) -> (i32, i32, i32) {
    %c0_i32 = arith.constant 0 : i32
    %c0_i32_0 = arith.constant 0 : i32
    return %arg0, %c0_i32, %arg1 : i32, i32, i32
  }
  func.func @transform_3(%arg0: i32, %arg1: i32) -> (i32, i32, i32) {
    %c0_i32 = arith.constant 0 : i32
    %c0_i32_0 = arith.constant 0 : i32
    return %arg0, %c0_i32, %arg1 : i32, i32, i32
  }
  func.func @transform_4(%arg0: i32, %arg1: i32) -> (i32, i32, i32) {
    %c0_i32 = arith.constant 0 : i32
    %c0_i32_0 = arith.constant 0 : i32
    return %arg0, %c0_i32, %arg1 : i32, i32, i32
  }
}

</mosaic_0001>

<llo_original>
// kernel: tpu_custom_call.1
$region0: #{tpu_custom_call.1}
  #allocation0 [shape = 'u32[]', space=smem, size = 0x4, offset = 0x4, fixed_abs, tag = 'smem constant byte address 0x4 - core index']
  #allocation1 [shape = 'u32[144,128]{1,0:T(1,128)}', space=vmem, size = 0x12000, scoped, tag = 'internal scratch']
  #allocation2 [shape = 'f32[1]{0:T(128)S(6)}', space=smem, size = 0x200, scoped, tag = 'scoped memory for tpu_custom_call.1']
  %s0 = inlined_call_operand.<no memory space> [shape: f32[1], index: 0, kind: input, shape index: {}]
  %s1 = inlined_call_operand.vmem [shape: s32[2,1,8], index: 1, kind: input, shape index: {}]
  %s2 = inlined_call_operand.vmem [shape: f32[2,16,8], index: 2, kind: input, shape index: {}]
  %s3 = inlined_call_operand.hbm [shape: f32[2,1,8], index: 3, kind: output, shape index: {0}]
  %s4 = inlined_call_operand.hbm [shape: f32[2,1,8], index: 4, kind: output, shape index: {1}]
  %5 = xla_tuple %s3, %s4
  %s6 = sld [smem:[#allocation0]]
  $region53: #{tpu_custom_call.1} parent=0
    _
  %s8 = ssub.s32 1, %s6
  %s9 = scalar_select 0, %s8, %s6
  %10 = sst [smem:[#allocation2]] %s0
  $region1: #{tpu_custom_call.1} parent=0
    #allocation3 [shape = 'u8[1024]{0}', space=vmem, size = 0x400, scoped, tag = 'output window, operand 0']
    #allocation4 [shape = 's32[2]{0}', space=sflag, size = 0x8, scoped, tag = 'scoped memory for tpu_custom_call.1']
    #allocation5 [shape = 'u8[1024]{0}', space=vmem, size = 0x400, scoped, tag = 'output window, operand 1']
    #allocation6 [shape = 's32[2]{0}', space=sflag, size = 0x8, scoped, tag = 'scoped memory for tpu_custom_call.1']
    %11 = vsyncpa [#allocation4], 0
    %s12 = scalar_lea.sflag [#allocation4], 1
    %13 = vsyncpa %s12, 0
    %14 = vsyncpa [#allocation6], 0
    %s15 = scalar_lea.sflag [#allocation6], 1
    %16 = vsyncpa %s15, 0
    loop: start=0, step=1, limit=4
    $region2: #{tpu_custom_call.1} parent=1 // loop_pre_header
      _
    $region3: #{tpu_custom_call.1} parent=1 // loop_header
      %s18 = sphi 0, %s22
      %p19 = scmp.ge.s32.totalorder %s18, 4
      %s25 = sphi 0, %s37
      %s26 = sphi 0, %s33
      %s27 = sphi 0, %s25
      %s28 = sphi 0, %s26
      %s29 = sphi 0, %s27
      %s30 = sphi 0, %s28
      %s38 = sphi 0, %s38
      %s40 = sphi 0, %s38
      %s41 = sphi 0, %s40
      %s55 = sphi 0, %s41
      %s63 = sphi 0, %s65
      %s66 = sphi 0, %s63
      %s67 = sphi 0, %s66
      %s83 = sphi 0, %s67
      %s91 = sphi 0, %s93
      %s94 = sphi 0, %s91
      %s95 = sphi 0, %s94
      %s111 = sphi 0, %s95
      %s119 = sphi 0, %s121
      %s122 = sphi 0, %s119
      %s123 = sphi 0, %s122
      %s139 = sphi 0, %s123
      %s147 = sphi 0, %s149
      %s150 = sphi 0, %s147
      %s151 = sphi 0, %s150
      %s167 = sphi 0, %s151
    $region4: #{tpu_custom_call.1} parent=1 // loop_header_branch
      %21 = sbr.rel (%p19) target = $region8
    $region5: #{tpu_custom_call.1} parent=1 // loop_body
      %s23 = ssub.s32 %s18, 1
      %s24 = ssub.s32 %s18, 2
      %s31 = sadd.s32 1, %s26
      %p32 = scmp.ge.s32.totalorder %s31, 1
      %s33 = scalar_select %p32, 0, %s31
      %s34 = sadd.s32 1, %s25
      %s35 = scalar_select %p32, %s34, %s25
      %p36 = scmp.ge.s32.totalorder %s35, 2
      %s37 = scalar_select %p36, 0, %s35
      %s39 = sadd.s32 %s38, 1
      %p42 = scmp.eq.s32.totalorder %s18, 1
      %p43 = scmp.ne.s32.totalorder %s38, %s40
      %p44 = scmp.eq.s32.totalorder %s18, 0
      %p45 = por %p43, %p44
      %p46 = scmp.ne.s32.totalorder %s38, %s40
      %p47 = scmp.eq.s32.totalorder %s23, 1
      %p48 = por %p46, %p47
      %p49 = scmp.ne.s32.totalorder %s40, %s41
      %p50 = scmp.eq.s32.totalorder %s23, 0
      %p51 = por %p49, %p50
      %p52 = scmp.ne.s32.totalorder %s40, %s41
      %p53 = scmp.eq.s32.totalorder %s24, 1
      %p54 = por %p52, %p53
      %p56 = scmp.ne.s32.totalorder %s41, %s55
      %p57 = scmp.eq.s32.totalorder %s24, 0
      %p58 = por %p56, %p57
      %s59 = ssub.s32 %s25, %s37
      %s60 = ssub.s32 %s26, %s33
      %s61 = sor.u32 %s59, %s60
      %p62 = scmp.eq.s32.totalorder %s61, 0
      %s64 = sadd.s32 %s63, 1
      %s65 = scalar_select %p62, %s63, %s64
      %p68 = pneg %p62
      %p69 = scmp.eq.s32.totalorder %s18, 1
      %p70 = por %p68, %p69
      %p71 = scmp.ne.s32.totalorder %s63, %s66
      %p72 = scmp.eq.s32.totalorder %s18, 0
      %p73 = por %p71, %p72
      %p74 = scmp.ne.s32.totalorder %s63, %s66
      %p75 = scmp.eq.s32.totalorder %s23, 1
      %p76 = por %p74, %p75
      %p77 = scmp.ne.s32.totalorder %s66, %s67
      %p78 = scmp.eq.s32.totalorder %s23, 0
      %p79 = por %p77, %p78
      %p80 = scmp.ne.s32.totalorder %s66, %s67
      %p81 = scmp.eq.s32.totalorder %s24, 1
      %p82 = por %p80, %p81
      %p84 = scmp.ne.s32.totalorder %s67, %s83
      %p85 = scmp.eq.s32.totalorder %s24, 0
      %p86 = por %p84, %p85
      %s87 = ssub.s32 %s25, %s37
      %s88 = ssub.s32 %s26, %s33
      %s89 = sor.u32 %s87, %s88
      %p90 = scmp.eq.s32.totalorder %s89, 0
      %s92 = sadd.s32 %s91, 1
      %s93 = scalar_select %p90, %s91, %s92
      %p96 = pneg %p90
      %p97 = scmp.eq.s32.totalorder %s18, 1
      %p98 = por %p96, %p97
      %p99 = scmp.ne.s32.totalorder %s91, %s94
      %p100 = scmp.eq.s32.totalorder %s18, 0
      %p101 = por %p99, %p100
      %p102 = scmp.ne.s32.totalorder %s91, %s94
      %p103 = scmp.eq.s32.totalorder %s23, 1
      %p104 = por %p102, %p103
      %p105 = scmp.ne.s32.totalorder %s94, %s95
      %p106 = scmp.eq.s32.totalorder %s23, 0
      %p107 = por %p105, %p106
      %p108 = scmp.ne.s32.totalorder %s94, %s95
      %p109 = scmp.eq.s32.totalorder %s24, 1
      %p110 = por %p108, %p109
      %p112 = scmp.ne.s32.totalorder %s95, %s111
      %p113 = scmp.eq.s32.totalorder %s24, 0
      %p114 = por %p112, %p113
      %s115 = ssub.s32 %s25, %s37
      %s116 = ssub.s32 %s26, %s33
      %s117 = sor.u32 %s115, %s116
      %p118 = scmp.eq.s32.totalorder %s117, 0
      %s120 = sadd.s32 %s119, 1
      %s121 = scalar_select %p118, %s119, %s120
      %p124 = pneg %p118
      %p125 = scmp.eq.s32.totalorder %s18, 1
      %p126 = por %p124, %p125
      %p127 = scmp.ne.s32.totalorder %s119, %s122
      %p128 = scmp.eq.s32.totalorder %s18, 0
      %p129 = por %p127, %p128
      %p130 = scmp.ne.s32.totalorder %s119, %s122
      %p131 = scmp.eq.s32.totalorder %s23, 1
      %p132 = por %p130, %p131
      %p133 = scmp.ne.s32.totalorder %s122, %s123
      %p134 = scmp.eq.s32.totalorder %s23, 0
      %p135 = por %p133, %p134
      %p136 = scmp.ne.s32.totalorder %s122, %s123
      %p137 = scmp.eq.s32.totalorder %s24, 1
      %p138 = por %p136, %p137
      %p140 = scmp.ne.s32.totalorder %s123, %s139
      %p141 = scmp.eq.s32.totalorder %s24, 0
      %p142 = por %p140, %p141
      %s143 = ssub.s32 %s25, %s37
      %s144 = ssub.s32 %s26, %s33
      %s145 = sor.u32 %s143, %s144
      %p146 = scmp.eq.s32.totalorder %s145, 0
      %s148 = sadd.s32 %s147, 1
      %s149 = scalar_select %p146, %s147, %s148
      %p152 = pneg %p146
      %p153 = scmp.eq.s32.totalorder %s18, 1
      %p154 = por %p152, %p153
      %p155 = scmp.ne.s32.totalorder %s147, %s150
      %p156 = scmp.eq.s32.totalorder %s18, 0
      %p157 = por %p155, %p156
      %p158 = scmp.ne.s32.totalorder %s147, %s150
      %p159 = scmp.eq.s32.totalorder %s23, 1
      %p160 = por %p158, %p159
      %p161 = scmp.ne.s32.totalorder %s150, %s151
      %p162 = scmp.eq.s32.totalorder %s23, 0
      %p163 = por %p161, %p162
      %p164 = scmp.ne.s32.totalorder %s150, %s151
      %p165 = scmp.eq.s32.totalorder %s24, 1
      %p166 = por %p164, %p165
      %p168 = scmp.ne.s32.totalorder %s151, %s167
      %p169 = scmp.eq.s32.totalorder %s24, 0
      %p170 = por %p168, %p169
      %p171 = scmp.le.s32.totalorder 1, %s18
      %p172 = scmp.lt.s32.totalorder %s18, 3
      %p173 = pnand %p171, %p172
      %p174 = pneg %p173
      // Predicated region
      $region9: #{tpu_custom_call.1} parent=5 // pred_check
        _
      $region10: #{tpu_custom_call.1} parent=5 // pred_check_branch
        %176 = sbr.rel (%p173) target = $region12
      $region11: #{tpu_custom_call.1} parent=5 // pred_region
        %s177 = ssub.s32 %s18, 1
        // Predicated region
        $region13: #{tpu_custom_call.1} parent=11 // pred_check
          %p178 = pneg %p51
        $region14: #{tpu_custom_call.1} parent=11 // pred_check_branch
          %180 = sbr.rel (%p178) target = $region16
        $region15: #{tpu_custom_call.1} parent=11 // pred_region
          _
        $region16: #{tpu_custom_call.1} parent=11 // pred_fallthru
          _
      $region12: #{tpu_custom_call.1} parent=5 // pred_fallthru
        _
      %p181 = scmp.lt.s32.totalorder %s18, 2
      // Predicated region
      $region17: #{tpu_custom_call.1} parent=5 // pred_check
        %p182 = pneg %p181
      $region18: #{tpu_custom_call.1} parent=5 // pred_check_branch
        %184 = sbr.rel (%p182) target = $region20
      $region19: #{tpu_custom_call.1} parent=5 // pred_region
        // Predicated region
        $region21: #{tpu_custom_call.1} parent=19 // pred_check
          %p185 = pneg %p73
        $region22: #{tpu_custom_call.1} parent=19 // pred_check_branch
          %187 = sbr.rel (%p185) target = $region24
        $region23: #{tpu_custom_call.1} parent=19 // pred_region
          %p188 = scmp.lt.s32.totalorder %s25, 1
          %s189 = scalar_select %p188, %s25, 1
          %p190 = scmp.lt.s32.totalorder %s26, 0
          %s191 = scalar_select %p190, %s26, 0
          %s192 = sadd.s32 %s191, %s189
          %s193 = scalar_lea.vmem %s1, %s192
        $region24: #{tpu_custom_call.1} parent=19 // pred_fallthru
          _
        // Predicated region
        $region25: #{tpu_custom_call.1} parent=19 // pred_check
          %p194 = pneg %p101
        $region26: #{tpu_custom_call.1} parent=19 // pred_check_branch
          %196 = sbr.rel (%p194) target = $region28
        $region27: #{tpu_custom_call.1} parent=19 // pred_region
          %p197 = scmp.lt.s32.totalorder %s25, 1
          %s198 = scalar_select %p197, %s25, 1
          %p199 = scmp.lt.s32.totalorder %s26, 0
          %s200 = scalar_select %p199, %s26, 0
          %s201 = smul.addr %s198, 2
          %s202 = sadd.s32 %s200, %s201
          %s203 = smul.addr %s202, 8
          %s204 = scalar_lea.vmem %s2, %s203
        $region28: #{tpu_custom_call.1} parent=19 // pred_fallthru
          _
      $region20: #{tpu_custom_call.1} parent=5 // pred_fallthru
        _
      %p205 = scmp.le.s32.totalorder 1, %s18
      %p206 = scmp.lt.s32.totalorder %s18, 3
      %p207 = pnand %p205, %p206
      %p208 = pneg %p207
      // Predicated region
      $region29: #{tpu_custom_call.1} parent=5 // pred_check
        _
      $region30: #{tpu_custom_call.1} parent=5 // pred_check_branch
        %210 = sbr.rel (%p207) target = $region32
      $region31: #{tpu_custom_call.1} parent=5 // pred_region
        %s211 = ssub.s32 %s18, 1
        %p212 = pneg %p51
        %p213 = pneg %p48
        %p214 = scmp.lt.s32.totalorder %s27, 1
        %s215 = scalar_select %p214, %s27, 1
        %p216 = scmp.lt.s32.totalorder %s28, 0
        %s217 = scalar_select %p216, %s28, 0
        %s218 = sadd.s32 %s217, %s215
        %s219 = scalar_lea.vmem %s1, %s218
        %p220 = pneg %p79
        %p221 = pneg %p76
        %p222 = scmp.lt.s32.totalorder %s27, 1
        %s223 = scalar_select %p222, %s27, 1
        %p224 = scmp.lt.s32.totalorder %s28, 0
        %s225 = scalar_select %p224, %s28, 0
        %s226 = smul.addr %s223, 2
        %s227 = sadd.s32 %s225, %s226
        %s228 = smul.addr %s227, 8
        %s229 = scalar_lea.vmem %s2, %s228
        %p230 = pneg %p107
        %p231 = pneg %p104
        %p232 = pneg %p135
        %p233 = pneg %p132
        %s234 = sand.u32 %s122, 1
        %s235 = scalar_lea.sflag [#allocation4], %s234
        %s236 = sand.u32 %s122, 1
        %s237 = scalar_lea.vmem [#allocation3], %s236
        %p238 = pneg %p163
        %p239 = pneg %p160
        %s240 = sand.u32 %s150, 1
        %s241 = scalar_lea.sflag [#allocation6], %s240
        %s242 = sand.u32 %s150, 1
        %s243 = scalar_lea.vmem [#allocation5], %s242
        %p244 = scmp.lt.s32.totalorder %s27, 1
        %s245 = scalar_select %p244, %s27, 1
        %p246 = scmp.lt.s32.totalorder %s28, 0
        %s247 = scalar_select %p246, %s28, 0
        %s248 = sadd.s32 %s247, %s245
        %s249 = scalar_lea.vmem %s1, %s248
        %p250 = scmp.lt.s32.totalorder %s27, 1
        %s251 = scalar_select %p250, %s27, 1
        %p252 = scmp.lt.s32.totalorder %s28, 0
        %s253 = scalar_select %p252, %s28, 0
        %s254 = smul.addr %s251, 2
        %s255 = sadd.s32 %s253, %s254
        %s256 = smul.addr %s255, 8
        %s257 = scalar_lea.vmem %s2, %s256
        %v258 = vld [vmem:[%s257] sm:$0xff]
        %v259 = vld [vmem:[%s257 + $0x8] sm:$0xff]
        %v260 = vld [vmem:[%s249] sm:$0x1]
        %v261 = vcvt.s32.f32 %v260
        %s262 = sld [smem:[#allocation2]]
        %v263 = vlaneseq
        %v264 = vshrl.u32 %v263, 7
        %v265 = vadd.s32 %v264, 8
        %v266 = vlaneseq
        %v267 = vand.u32 %v266, 127
        %s268 = smul.u32 %s28, 8
        %v269 = vstv %s268
        %v270 = vadd.s32 %v267, %v269
        %vm271 = vcmp.lt.s32.totalorder %v270, 8
        %vm272 = vcmp.ge.f32.partialorder %v258, 0.0
        %vm273 = vcmp.ge.f32.partialorder %v259, 0.0
        %v274 = vsel %vm271, 1, 0
        %vm275 = vcmp.eq.s32.totalorder %v274, 1
        %vm276 = vmand %vm272, %vm275
        %vm277 = vmand %vm273, %vm275
        %v278 = vsel %vm276, 1, 0
        %v279 = vsel %vm277, 1, 0
        %v280 = vcvt.s32.f32 %v278
        %v281 = vcvt.s32.f32 %v279
        %v282 = vrot.slane %v280, 7
        %v283 = vrot.slane %v281, 7
        %vm284 = vcmp.lt.s32.totalorder %v264, 1
        %v285 = vsel %vm284, %v282, %v283
        %v286 = vsel %vm284, %v283, %v282
        %vm287 = vcmp.ge.s32.totalorder %v264, 1
        %vm288 = vcmp.ge.s32.totalorder %v265, 1
        %v289 = vsel %vm287, %v286, 0.0
        %v290 = vsel %vm288, %v285, 0.0
        %v291 = vadd.f32 %v289, 0.0
        %v292 = vadd.f32 %v290, 0.0
        %v293 = vrot.slane %v280, 1
        %v294 = vrot.slane %v281, 1
        %vm295 = vcmp.lt.s32.totalorder %v264, 7
        %v296 = vsel %vm295, %v293, %v294
        %v297 = vsel %vm295, %v294, %v293
        %vm298 = vcmp.lt.s32.totalorder %v264, 15
        %vm299 = vcmp.lt.s32.totalorder %v265, 15
        %v300 = vsel %vm298, %v296, 0.0
        %v301 = vsel %vm299, %v297, 0.0
        %v302 = vadd.f32 %v300, 0.0
        %v303 = vadd.f32 %v301, 0.0
        %v304 = vrot.slane %v280, 6
        %v305 = vrot.slane %v281, 6
        %vm306 = vcmp.lt.s32.totalorder %v264, 2
        %v307 = vsel %vm306, %v304, %v305
        %v308 = vsel %vm306, %v305, %v304
        %vm309 = vcmp.ge.s32.totalorder %v264, 2
        %vm310 = vcmp.ge.s32.totalorder %v265, 2
        %v311 = vsel %vm309, %v308, 0.0
        %v312 = vsel %vm310, %v307, 0.0
        %v313 = vadd.f32 %v291, %v311
        %v314 = vadd.f32 %v292, %v312
        %v315 = vrot.slane %v280, 2
        %v316 = vrot.slane %v281, 2
        %vm317 = vcmp.lt.s32.totalorder %v264, 6
        %v318 = vsel %vm317, %v315, %v316
        %v319 = vsel %vm317, %v316, %v315
        %vm320 = vcmp.lt.s32.totalorder %v264, 14
        %vm321 = vcmp.lt.s32.totalorder %v265, 14
        %v322 = vsel %vm320, %v318, 0.0
        %v323 = vsel %vm321, %v319, 0.0
        %v324 = vadd.f32 %v302, %v322
        %v325 = vadd.f32 %v303, %v323
        %vm326 = vcmp.lt.f32.partialorder %v313, 0.5
        %vm327 = vcmp.lt.f32.partialorder %v314, 0.5
        %vm328 = vmand %vm276, %vm326
        %vm329 = vmand %vm277, %vm327
        %vm330 = vcmp.lt.f32.partialorder %v324, 0.5
        %vm331 = vcmp.lt.f32.partialorder %v325, 0.5
        %vm332 = vmand %vm276, %vm330
        %vm333 = vmand %vm277, %vm331
        %v334 = vsel %vm328, 1, 0
        %v335 = vsel %vm329, 1, 0
        %v336 = vcvt.s32.f32 %v334
        %v337 = vcvt.s32.f32 %v335
        %vm338 = vcmask 64512
        %v339 = vsel %vm338, %v336, 0.0
        %v340 = vsel %vm338, %v337, 0.0
        %v341 = vadd.f32 %v339, %v340
        %v342 = vrot.slane %v341, 4
        %v343 = vadd.f32 %v341, %v342
        %v344 = vrot.slane %v343, 2
        %v345 = vadd.f32 %v343, %v344
        %v346 = vrot.slane %v345, 1
        %v347 = vadd.f32 %v345, %v346
        %v348 = vsel %vm271, %v347, 0.0
        %vm349 = vcmask 57344
        %350 = vst.msk [vmem:[%s243] sm:$0x1] %vm349, %v348
        %s351 = smul.f32 %s262, 0.05
        %v352 = vstv %s351
        %v353 = vmul.f32 %v352, %v347
        %v354 = vadd.f32 %v313, %v324
        %v355 = vadd.f32 %v314, %v325
        %v356 = vadd.f32 %v354, %v280
        %v357 = vadd.f32 %v355, %v281
        %vm358 = vcmp.lt.f32.partialorder %v356, 0.5
        %vm359 = vcmp.lt.f32.partialorder %v357, 0.5
        %v360 = vsel %vm358, %v258, -1e+30
        %v361 = vsel %vm359, %v259, -1e+30
        %v362 = vsel %vm338, %v360, -inf
        %v363 = vsel %vm338, %v361, -inf
        %v364 = vmax.f32 %v362, %v363
        %v365 = vrot.slane %v364, 4
        %v366 = vmax.f32 %v364, %v365
        %v367 = vrot.slane %v366, 2
        %v368 = vmax.f32 %v366, %v367
        %v369 = vrot.slane %v368, 1
        %v370 = vmax.f32 %v368, %v369
        %vm371 = vcmp.gt.f32.partialorder %v370, -1e+29
        %v372 = vsel %vm276, %v264, 16
        %v373 = vsel %vm277, %v265, 16
        %v374 = vsel %vm338, %v372, 2147483647
        %v375 = vsel %vm338, %v373, 2147483647
        %vm376 = vcmp.lt.s32.totalorder %v374, %v375
        %v377 = vsel %vm376, %v374, %v375
        %v378 = vrot.slane %v377, 4
        %vm379 = vcmp.lt.s32.totalorder %v377, %v378
        %v380 = vsel %vm379, %v377, %v378
        %v381 = vrot.slane %v380, 2
        %vm382 = vcmp.lt.s32.totalorder %v380, %v381
        %v383 = vsel %vm382, %v380, %v381
        %v384 = vrot.slane %v383, 1
        %vm385 = vcmp.lt.s32.totalorder %v383, %v384
        %v386 = vsel %vm385, %v383, %v384
        %vm387 = vcmp.eq.s32.totalorder %v264, %v386
        %vm388 = vcmp.eq.s32.totalorder %v265, %v386
        %v389 = vsel %vm387, %v258, -1e+30
        %v390 = vsel %vm388, %v259, -1e+30
        %v391 = vsel %vm338, %v389, -inf
        %v392 = vsel %vm338, %v390, -inf
        %v393 = vmax.f32 %v391, %v392
        %v394 = vrot.slane %v393, 4
        %v395 = vmax.f32 %v393, %v394
        %v396 = vrot.slane %v395, 2
        %v397 = vmax.f32 %v395, %v396
        %v398 = vrot.slane %v397, 1
        %v399 = vmax.f32 %v397, %v398
        %v400 = vsub.f32 0.0, %v370
        %v401 = vsel %vm371, %v400, %v399
        %v402 = vadd.f32 %v401, %v353
        %v403 = vadd.f32 %v280, %v289
        %v404 = vadd.f32 %v281, %v290
        %v405 = vrot.slane %v403, 6
        %v406 = vrot.slane %v404, 6
        %v407 = vsel %vm306, %v405, %v406
        %v408 = vsel %vm306, %v406, %v405
        %v409 = vsel %vm309, %v408, 0.0
        %v410 = vsel %vm310, %v407, 0.0
        %v411 = vadd.f32 %v403, %v409
        %v412 = vadd.f32 %v404, %v410
        %v413 = vrot.slane %v411, 4
        %v414 = vrot.slane %v412, 4
        %vm415 = vcmp.lt.s32.totalorder %v264, 4
        %v416 = vsel %vm415, %v413, %v414
        %v417 = vsel %vm415, %v414, %v413
        %vm418 = vcmp.ge.s32.totalorder %v264, 4
        %vm419 = vcmp.ge.s32.totalorder %v265, 4
        %v420 = vsel %vm418, %v417, 0.0
        %v421 = vsel %vm419, %v416, 0.0
        %v422 = vadd.f32 %v411, %v420
        %v423 = vadd.f32 %v412, %v421
        %vm424 = vcmp.ge.s32.totalorder %v264, 8
        %vm425 = vcmp.ge.s32.totalorder %v265, 8
        %v426 = vsel %vm424, %v423, 0.0
        %v427 = vsel %vm425, %v422, 0.0
        %v428 = vadd.f32 %v422, %v426
        %v429 = vadd.f32 %v423, %v427
        %v430 = vcvt.f32.s32.to.zero.pseudo %v428
        %v431 = vcvt.f32.s32.to.zero.pseudo %v429
        %v432 = vsub.s32 %v430, 1
        %v433 = vsub.s32 %v431, 1
        %v434 = vsel %vm328, %v432, 4294967295
        %v435 = vsel %vm329, %v433, 4294967295
        %v436 = vsel %vm328, %v264, 4294967295
        %v437 = vsel %vm329, %v265, 4294967295
        %v438 = vrot.slane %v434, 7
        %v439 = vrot.slane %v435, 7
        %v440 = vsel %vm284, %v438, %v439
        %v441 = vsel %vm284, %v439, %v438
        %v442 = vrot.slane %v436, 7
        %v443 = vrot.slane %v437, 7
        %v444 = vsel %vm284, %v442, %v443
        %v445 = vsel %vm284, %v443, %v442
        %v446 = vsel %vm287, %v441, 4294967295
        %v447 = vsel %vm288, %v440, 4294967295
        %vm448 = vcmp.gt.s32.totalorder %v434, %v446
        %v449 = vsel %vm448, %v434, %v446
        %vm450 = vcmp.gt.s32.totalorder %v435, %v447
        %v451 = vsel %vm450, %v435, %v447
        %v452 = vsel %vm287, %v445, 4294967295
        %v453 = vsel %vm288, %v444, 4294967295
        %vm454 = vcmp.gt.s32.totalorder %v436, %v452
        %v455 = vsel %vm454, %v436, %v452
        %vm456 = vcmp.gt.s32.totalorder %v437, %v453
        %v457 = vsel %vm456, %v437, %v453
        %v458 = vrot.slane %v449, 6
        %v459 = vrot.slane %v451, 6
        %v460 = vsel %vm306, %v458, %v459
        %v461 = vsel %vm306, %v459, %v458
        %v462 = vrot.slane %v455, 6
        %v463 = vrot.slane %v457, 6
        %v464 = vsel %vm306, %v462, %v463
        %v465 = vsel %vm306, %v463, %v462
        %v466 = vsel %vm309, %v461, 4294967295
        %v467 = vsel %vm310, %v460, 4294967295
        %vm468 = vcmp.gt.s32.totalorder %v449, %v466
        %v469 = vsel %vm468, %v449, %v466
        %vm470 = vcmp.gt.s32.totalorder %v451, %v467
        %v471 = vsel %vm470, %v451, %v467
        %v472 = vsel %vm309, %v465, 4294967295
        %v473 = vsel %vm310, %v464, 4294967295
        %vm474 = vcmp.gt.s32.totalorder %v455, %v472
        %v475 = vsel %vm474, %v455, %v472
        %vm476 = vcmp.gt.s32.totalorder %v457, %v473
        %v477 = vsel %vm476, %v457, %v473
        %v478 = vrot.slane %v469, 4
        %v479 = vrot.slane %v471, 4
        %v480 = vsel %vm415, %v478, %v479
        %v481 = vsel %vm415, %v479, %v478
        %v482 = vrot.slane %v475, 4
        %v483 = vrot.slane %v477, 4
        %v484 = vsel %vm415, %v482, %v483
        %v485 = vsel %vm415, %v483, %v482
        %v486 = vsel %vm418, %v481, 4294967295
        %v487 = vsel %vm419, %v480, 4294967295
        %vm488 = vcmp.gt.s32.totalorder %v469, %v486
        %v489 = vsel %vm488, %v469, %v486
        %vm490 = vcmp.gt.s32.totalorder %v471, %v487
        %v491 = vsel %vm490, %v471, %v487
        %v492 = vsel %vm418, %v485, 4294967295
        %v493 = vsel %vm419, %v484, 4294967295
        %vm494 = vcmp.gt.s32.totalorder %v475, %v492
        %v495 = vsel %vm494, %v475, %v492
        %vm496 = vcmp.gt.s32.totalorder %v477, %v493
        %v497 = vsel %vm496, %v477, %v493
        %v498 = vsel %vm424, %v491, 4294967295
        %v499 = vsel %vm425, %v489, 4294967295
        %vm500 = vcmp.gt.s32.totalorder %v489, %v498
        %v501 = vsel %vm500, %v489, %v498
        %vm502 = vcmp.gt.s32.totalorder %v491, %v499
        %v503 = vsel %vm502, %v491, %v499
        %v504 = vsel %vm424, %v497, 4294967295
        %v505 = vsel %vm425, %v495, 4294967295
        %vm506 = vcmp.gt.s32.totalorder %v495, %v504
        %v507 = vsel %vm506, %v495, %v504
        %vm508 = vcmp.gt.s32.totalorder %v497, %v505
        %v509 = vsel %vm508, %v497, %v505
        %v510 = vsub.s32 %v430, %v501
        %v511 = vsub.s32 %v431, %v503
        %v512 = vmul.u32 %v510, 16
        %v513 = vmul.u32 %v511, 16
        %v514 = vadd.s32 %v512, %v507
        %v515 = vadd.s32 %v513, %v509
        %v516 = vsel %vm332, %v514, 2147483647
        %v517 = vsel %vm333, %v515, 2147483647
        %v518 = vsel %vm338, %v516, 2147483647
        %v519 = vsel %vm338, %v517, 2147483647
        %vm520 = vcmp.lt.s32.totalorder %v518, %v519
        %v521 = vsel %vm520, %v518, %v519
        %v522 = vrot.slane %v521, 4
        %vm523 = vcmp.lt.s32.totalorder %v521, %v522
        %v524 = vsel %vm523, %v521, %v522
        %v525 = vrot.slane %v524, 2
        %vm526 = vcmp.lt.s32.totalorder %v524, %v525
        %v527 = vsel %vm526, %v524, %v525
        %v528 = vrot.slane %v527, 1
        %vm529 = vcmp.lt.s32.totalorder %v527, %v528
        %v530 = vsel %vm529, %v527, %v528
        %vm531 = vcmp.eq.s32.totalorder %v516, %v530
        %vm532 = vcmp.eq.s32.totalorder %v517, %v530
        %vm533 = vmand %vm332, %vm531
        %vm534 = vmand %vm333, %vm532
        %v535 = vsel %vm533, %v264, 16
        %v536 = vsel %vm534, %v265, 16
        %v537 = vsel %vm338, %v535, 2147483647
        %v538 = vsel %vm338, %v536, 2147483647
        %vm539 = vcmp.lt.s32.totalorder %v537, %v538
        %v540 = vsel %vm539, %v537, %v538
        %v541 = vrot.slane %v540, 4
        %vm542 = vcmp.lt.s32.totalorder %v540, %v541
        %v543 = vsel %vm542, %v540, %v541
        %v544 = vrot.slane %v543, 2
        %vm545 = vcmp.lt.s32.totalorder %v543, %v544
        %v546 = vsel %vm545, %v543, %v544
        %v547 = vrot.slane %v546, 1
        %vm548 = vcmp.lt.s32.totalorder %v546, %v547
        %v549 = vsel %vm548, %v546, %v547
        %v550 = vsel %vm533, %v507, 16
        %v551 = vsel %vm534, %v509, 16
        %v552 = vsel %vm338, %v550, 2147483647
        %v553 = vsel %vm338, %v551, 2147483647
        %vm554 = vcmp.lt.s32.totalorder %v552, %v553
        %v555 = vsel %vm554, %v552, %v553
        %v556 = vrot.slane %v555, 4
        %vm557 = vcmp.lt.s32.totalorder %v555, %v556
        %v558 = vsel %vm557, %v555, %v556
        %v559 = vrot.slane %v558, 2
        %vm560 = vcmp.lt.s32.totalorder %v558, %v559
        %v561 = vsel %vm560, %v558, %v559
        %v562 = vrot.slane %v561, 1
        %vm563 = vcmp.lt.s32.totalorder %v561, %v562
        %v564 = vsel %vm563, %v561, %v562
        %vm565 = vcmp.ge.s32.totalorder %v264, %v564
        %vm566 = vcmp.ge.s32.totalorder %v265, %v564
        %vm567 = vcmp.le.s32.totalorder %v264, %v549
        %vm568 = vcmp.le.s32.totalorder %v265, %v549
        %vm569 = vmand %vm565, %vm567
        %vm570 = vmand %vm566, %vm568
        %v571 = vsel %vm569, %v258, -1e+30
        %v572 = vsel %vm570, %v259, -1e+30
        %v573 = vsel %vm338, %v571, -inf
        %v574 = vsel %vm338, %v572, -inf
        %v575 = vmax.f32 %v573, %v574
        %v576 = vrot.slane %v575, 4
        %v577 = vmax.f32 %v575, %v576
        %v578 = vrot.slane %v577, 2
        %v579 = vmax.f32 %v577, %v578
        %v580 = vrot.slane %v579, 1
        %v581 = vmax.f32 %v579, %v580
        %v582 = vadd.f32 %v581, %v353
        %vm583 = vcmp.gt.f32.partialorder %v261, %v347
        %v584 = vsel %vm583, %v402, 0.0
        %vm585 = vcmp.lt.f32.partialorder %v261, %v347
        %v586 = vsel %vm585, %v582, 0.0
        %v587 = vadd.f32 %v584, %v586
        %v588 = vsel %vm271, %v587, 0.0
        %589 = vst.msk [vmem:[%s237] sm:$0x1] %vm349, %v588
        %s590 = sand.u32 %s122, 1
        %s591 = scalar_lea.sflag [#allocation4], %s590
        %s592 = sand.u32 %s122, 1
        %s593 = scalar_lea.vmem [#allocation3], %s592
        %s594 = sand.u32 %s150, 1
        %s595 = scalar_lea.sflag [#allocation6], %s594
        %s596 = sand.u32 %s150, 1
        %s597 = scalar_lea.vmem [#allocation5], %s596
        // Predicated region
        $region33: #{tpu_custom_call.1} parent=31 // pred_check
          %p598 = pneg %p132
        $region34: #{tpu_custom_call.1} parent=31 // pred_check_branch
          %600 = sbr.rel (%p598) target = $region36
        $region35: #{tpu_custom_call.1} parent=31 // pred_region
          %s602 = ssub.s32 16, 16
          %603 = vsyncadd %s591, %s602
          %s604 = sadd.s32 %s28, %s27
          %s605 = smul.addr %s604, 16
          %s606 = scalar_lea.hbm %s3, %s605
          %s608 = sshll.u32 %s593, 4
          %s609 = int_to_ptr.vmem [resolvable:$true] %s608
          %611 = dma.vmem_to_hbm [thread:$0]  %s609, 16, %s606, %s591
        $region36: #{tpu_custom_call.1} parent=31 // pred_fallthru
          _
        // Predicated region
        $region37: #{tpu_custom_call.1} parent=31 // pred_check
          %p612 = pneg %p160
        $region38: #{tpu_custom_call.1} parent=31 // pred_check_branch
          %614 = sbr.rel (%p612) target = $region40
        $region39: #{tpu_custom_call.1} parent=31 // pred_region
          %s616 = ssub.s32 16, 16
          %617 = vsyncadd %s595, %s616
          %s618 = sadd.s32 %s28, %s27
          %s619 = smul.addr %s618, 16
          %s620 = scalar_lea.hbm %s4, %s619
          %s622 = sshll.u32 %s597, 4
          %s623 = int_to_ptr.vmem [resolvable:$true] %s622
          %625 = dma.vmem_to_hbm [thread:$0]  %s623, 16, %s620, %s595
        $region40: #{tpu_custom_call.1} parent=31 // pred_fallthru
          _
      $region32: #{tpu_custom_call.1} parent=5 // pred_fallthru
        _
      %p626 = scmp.le.s32.totalorder 2, %s18
      // Predicated region
      $region41: #{tpu_custom_call.1} parent=5 // pred_check
        %p627 = pneg %p626
      $region42: #{tpu_custom_call.1} parent=5 // pred_check_branch
        %629 = sbr.rel (%p627) target = $region44
      $region43: #{tpu_custom_call.1} parent=5 // pred_region
        %s630 = ssub.s32 %s18, 2
        // Predicated region
        $region45: #{tpu_custom_call.1} parent=43 // pred_check
          %p631 = pneg %p138
        $region46: #{tpu_custom_call.1} parent=43 // pred_check_branch
          %633 = sbr.rel (%p631) target = $region48
        $region47: #{tpu_custom_call.1} parent=43 // pred_region
          %s634 = sand.u32 %s123, 1
          %s635 = scalar_lea.sflag [#allocation4], %s634
          %s636 = sand.u32 %s123, 1
          %s637 = scalar_lea.vmem [#allocation3], %s636
          %638 = dma.done %s635, 16
        $region48: #{tpu_custom_call.1} parent=43 // pred_fallthru
          _
        // Predicated region
        $region49: #{tpu_custom_call.1} parent=43 // pred_check
          %p639 = pneg %p166
        $region50: #{tpu_custom_call.1} parent=43 // pred_check_branch
          %641 = sbr.rel (%p639) target = $region52
        $region51: #{tpu_custom_call.1} parent=43 // pred_region
          %s642 = sand.u32 %s151, 1
          %s643 = scalar_lea.sflag [#allocation6], %s642
          %s644 = sand.u32 %s151, 1
          %s645 = scalar_lea.vmem [#allocation5], %s644
          %646 = dma.done %s643, 16
        $region52: #{tpu_custom_call.1} parent=43 // pred_fallthru
          _
      $region44: #{tpu_custom_call.1} parent=5 // pred_fallthru
        _
    $region6: #{tpu_custom_call.1} parent=1 // loop_footer
      %s22 = sadd.s32 1, %s18
    $region7: #{tpu_custom_call.1} parent=1 // loop_footer_branch
      %17 = sbr.rel target = $region3
    $region8: #{tpu_custom_call.1} parent=1 // loop_exit
      _
    %647 = vsyncpa [#allocation4], 1
    %s648 = scalar_lea.sflag [#allocation4], 1
    %649 = vsyncpa %s648, 1
    %650 = vsyncpa [#allocation6], 1
    %s651 = scalar_lea.sflag [#allocation6], 1
    %652 = vsyncpa %s651, 1

</llo_original>
